<compile_context>
chip_gen: v7x
topology: tpu7x:2x2x1
jax: 0.10.0
libtpu: 0.0.40
codegen_flags: <defaults>
</compile_context>

<pallas_src>
import jax
import jax.numpy as jnp
from jax.experimental import pallas as pl
from jax.experimental.pallas import tpu as pltpu

LANE = 128  # lane width the layer-3 weight is padded to (MXU-friendly matmul)


def _round_up(x: int, m: int) -> int:
    return ((x + m - 1) // m) * m


def critic_kernel(x_ref, w1_ref, b1_ref, w2_ref, b2_ref, w3_ref, b3_ref, out_ref):
    """One batch tile: Linear+ReLU -> Linear+ReLU -> Linear (scalar value head).

    Matmuls run on the MXU in the weights' dtype (f32 or bf16) with f32
    accumulation; bias add / ReLU stay in f32.  Only column 0 of the
    lane-padded layer-3 result is stored (narrow (tile_b, 1) output).
    """
    mm_dtype = w1_ref.dtype
    x = x_ref[...].astype(mm_dtype)  # cast in VMEM; x stays f32 in HBM

    # Layer 1: Linear + ReLU
    h1 = jnp.dot(x, w1_ref[...], preferred_element_type=jnp.float32) + b1_ref[...]
    h1 = jnp.maximum(h1, 0.0)

    # Layer 2: Linear + ReLU
    h2 = jnp.dot(h1.astype(mm_dtype), w2_ref[...],
                 preferred_element_type=jnp.float32) + b2_ref[...]
    h2 = jnp.maximum(h2, 0.0)

    # Layer 3: value head.  w3 is lane-padded to (n_hiddens, 128); compute the
    # full-lane result in-register, store only the real value column.
    v = jnp.dot(h2.astype(mm_dtype), w3_ref[...],
                preferred_element_type=jnp.float32)
    out_ref[...] = (v[:, :1] + b3_ref[...]).astype(out_ref.dtype)


def prepare_critic_params(params, matmul_dtype=jnp.bfloat16):
    """One-time param prep (hoisted out of the per-call path).

    Casts weights to the matmul dtype, pads the 1-wide value head to a
    128-lane slab (zero columns), and keeps biases in f32.
    """
    w1, b1, w2, b2, w3, b3 = params
    n_hiddens = w1.shape[1]
    assert w3.shape[1] == 1, "Critic value head must be 1-wide"

    w3p = (jnp.zeros((n_hiddens, LANE), matmul_dtype)
           .at[:, :1].set(w3.astype(matmul_dtype)))
    return (
        w1.astype(matmul_dtype), b1.astype(jnp.float32),
        w2.astype(matmul_dtype), b2.astype(jnp.float32),
        w3p, b3.astype(jnp.float32).reshape(1, 1),
    )


def critic_forward(x, prepared_params, *, tile_b=1024, core_parallel=False):
    """Critic forward: (batch, n_states) f32 -> (batch, 1) f32 state values."""
    w1, b1, w2, b2, w3p, b3 = prepared_params
    batch, n_states = x.shape
    assert w1.shape[0] == n_states

    # Batch tile: multiple of 8 sublanes, no larger than the (rounded) batch.
    tile_b = max(8, min(int(tile_b), _round_up(batch, 8)))
    tile_b = _round_up(tile_b, 8)
    if core_parallel:
        # Ensure >= 2 grid steps so both v7x TensorCores get work.
        tile_b = max(8, min(tile_b, _round_up(-(-batch // 2), 8)))

    grid = (pl.cdiv(batch, tile_b),)  # ragged last tile is clipped by Pallas

    def resident(a):
        # Weights/biases: same block every grid step -> stays VMEM-resident.
        return pl.BlockSpec(a.shape, lambda i: (0, 0))

    dim_sem = (pltpu.CORE_PARALLEL,) if core_parallel else ("parallel",)

    out = pl.pallas_call(
        critic_kernel,
        out_shape=jax.ShapeDtypeStruct((batch, 1), jnp.float32),
        grid=grid,
        in_specs=[
            pl.BlockSpec((tile_b, n_states), lambda i: (i, 0)),  # x: batch-tiled
            resident(w1), resident(b1),
            resident(w2), resident(b2),
            resident(w3p), resident(b3),
        ],
        out_specs=pl.BlockSpec((tile_b, 1), lambda i: (i, 0)),   # narrow output
        compiler_params=pltpu.CompilerParams(dimension_semantics=dim_sem),
    )(x, w1, b1, w2, b2, w3p, b3)

    return out


def init_critic_params(key, n_states, n_hiddens):
    """Deterministic synthetic init (uniform, roughly like PyTorch's default)."""
    ks = jax.random.split(key, 6)

    def lin(kw, kb, fan_in, fan_out):
        bound = 1.0 / jnp.sqrt(jnp.float32(fan_in))
        w = jax.random.uniform(kw, (fan_in, fan_out), jnp.float32, -bound, bound)
        b = jax.random.uniform(kb, (1, fan_out), jnp.float32, -bound, bound)
        return w, b

    w1, b1 = lin(ks[0], ks[1], n_states, n_hiddens)
    w2, b2 = lin(ks[2], ks[3], n_hiddens, n_hiddens)
    w3, b3 = lin(ks[4], ks[5], n_hiddens, 1)
    return (w1, b1, w2, b2, w3, b3)


if __name__ == "__main__":
    # Small shapes consistent with the module (Critic default n_hiddens=256).
    batch, n_states, n_hiddens = 16, 32, 256

    key = jax.random.PRNGKey(0)
    k_x, k_p = jax.random.split(key)

    x = jax.random.normal(k_x, (batch, n_states), jnp.float32)
    params = init_critic_params(k_p, n_states, n_hiddens)

    # Plain-JAX reference.
    w1, b1, w2, b2, w3, b3 = params
    h = jnp.maximum(x @ w1 + b1, 0.0)
    h = jnp.maximum(h @ w2 + b2, 0.0)
    ref = h @ w3 + b3

    # f32 matmul path — tight check.
    prep_f32 = prepare_critic_params(params, matmul_dtype=jnp.float32)
    values = jax.block_until_ready(critic_forward(x, prep_f32))
    assert values.shape == (batch, 1)
    assert jnp.allclose(values, ref, atol=1e-5, rtol=1e-5)

    # Ragged batch (partial last tile, no wrapper padding) — f32, tight check.
    x_rag = x[:13]
    values_rag = jax.block_until_ready(critic_forward(x_rag, prep_f32, tile_b=8))
    assert values_rag.shape == (13, 1)
    assert jnp.allclose(values_rag, ref[:13], atol=1e-5, rtol=1e-5)

    # bf16 matmul operands (prepare-time default, MXU fast path) — loose check.
    prep_bf16 = prepare_critic_params(params)
    values_bf16 = jax.block_until_ready(critic_forward(x, prep_bf16))
    assert values_bf16.shape == (batch, 1)
    assert jnp.allclose(values_bf16, ref, atol=1e-1, rtol=1e-1)

    print("KERNEL_OK")
</pallas_src>

<mosaic_0001>
module attributes {stable_mosaic.version = 11 : i64} {
  func.func @critic_kernel(%arg0: i32, %arg1: memref<16x32xf32, #tpu.memory_space<vmem>>, %arg2: memref<32x256xf32, #tpu.memory_space<vmem>>, %arg3: memref<1x256xf32, #tpu.memory_space<vmem>>, %arg4: memref<256x256xf32, #tpu.memory_space<vmem>>, %arg5: memref<1x256xf32, #tpu.memory_space<vmem>>, %arg6: memref<256x128xf32, #tpu.memory_space<vmem>>, %arg7: memref<1x1xf32, #tpu.memory_space<vmem>>, %arg8: memref<16x1xf32, #tpu.memory_space<vmem>>) attributes {dimension_semantics = [#tpu.dimension_semantics<parallel>], iteration_bounds = array<i64: 1>, scalar_prefetch = 0 : i64, scratch_operands = 0 : i64, tpu.core_type = #tpu.core_type<tc>, window_params = [{transform_indices = @transform_0, window_bounds = array<i64: 16, 32>}, {pipeline_mode = #tpu.pipeline_mode<synchronous>, transform_indices = @transform_1, window_bounds = array<i64: 32, 256>}, {pipeline_mode = #tpu.pipeline_mode<synchronous>, transform_indices = @transform_2, window_bounds = array<i64: 1, 256>}, {pipeline_mode = #tpu.pipeline_mode<synchronous>, transform_indices = @transform_3, window_bounds = array<i64: 256, 256>}, {pipeline_mode = #tpu.pipeline_mode<synchronous>, transform_indices = @transform_4, window_bounds = array<i64: 1, 256>}, {pipeline_mode = #tpu.pipeline_mode<synchronous>, transform_indices = @transform_5, window_bounds = array<i64: 256, 128>}, {pipeline_mode = #tpu.pipeline_mode<synchronous>, transform_indices = @transform_6, window_bounds = array<i64: 1, 1>}, {transform_indices = @transform_7, window_bounds = array<i64: 16, 1>}]} {
    %c0 = arith.constant 0 : index
    %c0_0 = arith.constant 0 : index
    %0 = vector.load %arg1[%c0, %c0_0] : memref<16x32xf32, #tpu.memory_space<vmem>>, vector<16x32xf32>
    %c0_1 = arith.constant 0 : index
    %c0_2 = arith.constant 0 : index
    %1 = vector.load %arg2[%c0_1, %c0_2] : memref<32x256xf32, #tpu.memory_space<vmem>>, vector<32x256xf32>
    %cst = arith.constant dense<0.000000e+00> : vector<16x256xf32>
    %2 = tpu.matmul %0, %1, %cst {dimension_numbers = #tpu.dot_dimension_numbers<[1], [0], [0], [1], [0, 0, 1, 1], [], []>} : vector<16x32xf32>, vector<32x256xf32>, vector<16x256xf32> -> vector<16x256xf32>
    %c0_3 = arith.constant 0 : index
    %c0_4 = arith.constant 0 : index
    %3 = vector.load %arg3[%c0_3, %c0_4] : memref<1x256xf32, #tpu.memory_space<vmem>>, vector<1x256xf32>
    %4 = vector.broadcast %3 : vector<1x256xf32> to vector<16x256xf32>
    %5 = arith.addf %2, %4 : vector<16x256xf32>
    %cst_5 = arith.constant 0.000000e+00 : f32
    %6 = vector.broadcast %cst_5 : f32 to vector<16x256xf32>
    %7 = arith.maximumf %5, %6 : vector<16x256xf32>
    %c0_6 = arith.constant 0 : index
    %c0_7 = arith.constant 0 : index
    %8 = vector.load %arg4[%c0_6, %c0_7] : memref<256x256xf32, #tpu.memory_space<vmem>>, vector<256x256xf32>
    %cst_8 = arith.constant dense<0.000000e+00> : vector<16x256xf32>
    %9 = tpu.matmul %7, %8, %cst_8 {dimension_numbers = #tpu.dot_dimension_numbers<[1], [0], [0], [1], [0, 0, 1, 1], [], []>} : vector<16x256xf32>, vector<256x256xf32>, vector<16x256xf32> -> vector<16x256xf32>
    %c0_9 = arith.constant 0 : index
    %c0_10 = arith.constant 0 : index
    %10 = vector.load %arg5[%c0_9, %c0_10] : memref<1x256xf32, #tpu.memory_space<vmem>>, vector<1x256xf32>
    %11 = vector.broadcast %10 : vector<1x256xf32> to vector<16x256xf32>
    %12 = arith.addf %9, %11 : vector<16x256xf32>
    %cst_11 = arith.constant 0.000000e+00 : f32
    %13 = vector.broadcast %cst_11 : f32 to vector<16x256xf32>
    %14 = arith.maximumf %12, %13 : vector<16x256xf32>
    %c0_12 = arith.constant 0 : index
    %c0_13 = arith.constant 0 : index
    %15 = vector.load %arg6[%c0_12, %c0_13] : memref<256x128xf32, #tpu.memory_space<vmem>>, vector<256x128xf32>
    %cst_14 = arith.constant dense<0.000000e+00> : vector<16x128xf32>
    %16 = tpu.matmul %14, %15, %cst_14 {dimension_numbers = #tpu.dot_dimension_numbers<[1], [0], [0], [1], [0, 0, 1, 1], [], []>} : vector<16x256xf32>, vector<256x128xf32>, vector<16x128xf32> -> vector<16x128xf32>
    %17 = vector.extract_strided_slice %16 {offsets = [0, 0], sizes = [16, 1], strides = [1, 1]} : vector<16x128xf32> to vector<16x1xf32>
    %c0_15 = arith.constant 0 : index
    %c0_16 = arith.constant 0 : index
    %18 = vector.load %arg7[%c0_15, %c0_16] : memref<1x1xf32, #tpu.memory_space<vmem>>, vector<1x1xf32>
    %19 = vector.broadcast %18 : vector<1x1xf32> to vector<16x1xf32>
    %20 = arith.addf %17, %19 : vector<16x1xf32>
    %c0_17 = arith.constant 0 : index
    %c0_18 = arith.constant 0 : index
    %21 = vector.load %arg8[%c0_17, %c0_18] : memref<16x1xf32, #tpu.memory_space<vmem>>, vector<16x1xf32>
    tpu.vector_store %arg8[%c0_17, %c0_18], %20 {strides = array<i32>} : memref<16x1xf32, #tpu.memory_space<vmem>>, vector<16x1xf32>,
    return
  }
  func.func @transform_0(%arg0: i32) -> (i32, i32) {
    %c0_i32 = arith.constant 0 : i32
    %c0_i32_0 = arith.constant 0 : i32
    return %arg0, %c0_i32 : i32, i32
  }
  func.func @transform_1(%arg0: i32) -> (i32, i32) {
    %c0_i32 = arith.constant 0 : i32
    %c0_i32_0 = arith.constant 0 : i32
    %c0_i32_1 = arith.constant 0 : i32
    return %c0_i32, %c0_i32_0 : i32, i32
  }
  func.func @transform_2(%arg0: i32) -> (i32, i32) {
    %c0_i32 = arith.constant 0 : i32
    %c0_i32_0 = arith.constant 0 : i32
    %c0_i32_1 = arith.constant 0 : i32
    return %c0_i32, %c0_i32_0 : i32, i32
  }
  func.func @transform_3(%arg0: i32) -> (i32, i32) {
    %c0_i32 = arith.constant 0 : i32
    %c0_i32_0 = arith.constant 0 : i32
    %c0_i32_1 = arith.constant 0 : i32
    return %c0_i32, %c0_i32_0 : i32, i32
  }
  func.func @transform_4(%arg0: i32) -> (i32, i32) {
    %c0_i32 = arith.constant 0 : i32
    %c0_i32_0 = arith.constant 0 : i32
    %c0_i32_1 = arith.constant 0 : i32
    return %c0_i32, %c0_i32_0 : i32, i32
  }
  func.func @transform_5(%arg0: i32) -> (i32, i32) {
    %c0_i32 = arith.constant 0 : i32
    %c0_i32_0 = arith.constant 0 : i32
    %c0_i32_1 = arith.constant 0 : i32
    return %c0_i32, %c0_i32_0 : i32, i32
  }
  func.func @transform_6(%arg0: i32) -> (i32, i32) {
    %c0_i32 = arith.constant 0 : i32
    %c0_i32_0 = arith.constant 0 : i32
    %c0_i32_1 = arith.constant 0 : i32
    return %c0_i32, %c0_i32_0 : i32, i32
  }
  func.func @transform_7(%arg0: i32) -> (i32, i32) {
    %c0_i32 = arith.constant 0 : i32
    %c0_i32_0 = arith.constant 0 : i32
    return %arg0, %c0_i32 : i32, i32
  }
}

</mosaic_0001>

<llo_original>
// kernel: tpu_custom_call.1
$region0: #{tpu_custom_call.1}
  #allocation0 [shape = 'u32[]', space=smem, size = 0x4, offset = 0x4, fixed_abs, tag = 'smem constant byte address 0x4 - core index']
  #allocation1 [shape = 'u32[144,128]{1,0:T(1,128)}', space=vmem, size = 0x12000, scoped, tag = 'internal scratch']
  #allocation2 [shape = 'f32[1,1]{1,0:T(1,128)S(1)}', space=vmem, size = 0x200, scoped, tag = 'scoped memory for tpu_custom_call.1']
  %s0 = inlined_call_operand.hbm [shape: f32[16,32], index: 0, kind: input, shape index: {}]
  %s1 = inlined_call_operand.hbm [shape: f32[32,256], index: 1, kind: input, shape index: {}]
  %s2 = inlined_call_operand.vmem [shape: f32[1,256], index: 2, kind: input, shape index: {}]
  %s3 = inlined_call_operand.hbm [shape: f32[256,256], index: 3, kind: input, shape index: {}]
  %s4 = inlined_call_operand.vmem [shape: f32[1,256], index: 4, kind: input, shape index: {}]
  %s5 = inlined_call_operand.hbm [shape: f32[256,128], index: 5, kind: input, shape index: {}]
  %s6 = inlined_call_operand.<no memory space> [shape: f32[1,1], index: 6, kind: input, shape index: {}]
  %s7 = inlined_call_operand.vmem [shape: f32[16,1], index: 7, kind: output, shape index: {}]
  %s8 = sld [smem:[#allocation0]]
  $region54: #{tpu_custom_call.1} parent=0
    _
  %s10 = ssub.s32 1, %s8
  %s11 = scalar_select 0, %s10, %s8
  %v12 = vstv %s6
  %13 = vst [vmem:[#allocation2] sm:$0x1] %v12
  $region1: #{tpu_custom_call.1} parent=0
    #allocation3 [shape = 'u8[8192]{0}', space=vmem, size = 0x2000, scoped, tag = 'input window, operand 0, single buffered']
    #allocation4 [shape = 's32[1]{0}', space=sflag, size = 0x4, scoped, tag = 'scoped memory for tpu_custom_call.1']
    #allocation5 [shape = 'u8[32768]{0}', space=vmem, size = 0x8000, scoped, tag = 'input window, operand 1, single buffered']
    #allocation6 [shape = 's32[1]{0}', space=sflag, size = 0x4, scoped, tag = 'scoped memory for tpu_custom_call.1']
    #allocation7 [shape = 'u8[262144]{0}', space=vmem, size = 0x40000, scoped, tag = 'input window, operand 3, single buffered']
    #allocation8 [shape = 'u8[131072]{0}', space=vmem, size = 0x20000, scoped, tag = 'input window, operand 5, single buffered']
    #allocation9 [shape = 's32[1]{0}', space=sflag, size = 0x4, scoped, tag = 'scoped memory for tpu_custom_call.1']
    %14 = vsyncpa [#allocation4], 0
    %15 = vsyncpa [#allocation6], 0
    %16 = vsyncpa [#allocation9], 0
    // Predicated region
    $region2: #{tpu_custom_call.1} parent=1 // pred_check
      _
    $region3: #{tpu_custom_call.1} parent=1 // pred_check_branch
      %18 = sbr.rel (0) target = $region5
    $region4: #{tpu_custom_call.1} parent=1 // pred_region
      %s20 = ssub.s32 256, 256
      %21 = vsyncadd [#allocation4], %s20
      %s22 = sshll.u32 [#allocation3], 4
      %s23 = int_to_ptr.vmem [resolvable:$true] %s22
      %28 = dma.hbm_to_vmem [thread:$0]  %s0, 256, %s23, [#allocation4], 128, 128, 8
    $region5: #{tpu_custom_call.1} parent=1 // pred_fallthru
      _
    // Predicated region
    $region6: #{tpu_custom_call.1} parent=1 // pred_check
      _
    $region7: #{tpu_custom_call.1} parent=1 // pred_check_branch
      %30 = sbr.rel (0) target = $region9
    $region8: #{tpu_custom_call.1} parent=1 // pred_region
      %s32 = ssub.s32 1024, 1024
      %33 = vsyncadd [#allocation6], %s32
      %s34 = sshll.u32 [#allocation5], 4
      %s35 = int_to_ptr.vmem [resolvable:$true] %s34
      %40 = dma.hbm_to_vmem [thread:$0]  %s1, 1024, %s35, [#allocation6], 256, 256, 16
    $region9: #{tpu_custom_call.1} parent=1 // pred_fallthru
      _
    // Predicated region
    $region10: #{tpu_custom_call.1} parent=1 // pred_check
      _
    $region11: #{tpu_custom_call.1} parent=1 // pred_check_branch
      %42 = sbr.rel (0) target = $region13
    $region12: #{tpu_custom_call.1} parent=1 // pred_region
      _
    $region13: #{tpu_custom_call.1} parent=1 // pred_fallthru
      _
    // Predicated region
    $region14: #{tpu_custom_call.1} parent=1 // pred_check
      _
    $region15: #{tpu_custom_call.1} parent=1 // pred_check_branch
      %44 = sbr.rel (0) target = $region17
    $region16: #{tpu_custom_call.1} parent=1 // pred_region
      %s46 = ssub.s32 8192, 8192
      %47 = vsyncadd [#allocation6], %s46
      %s48 = sshll.u32 [#allocation7], 4
      %s49 = int_to_ptr.vmem [resolvable:$true] %s48
      %54 = dma.hbm_to_vmem [thread:$0]  %s3, 8192, %s49, [#allocation6], 256, 256, 16
    $region17: #{tpu_custom_call.1} parent=1 // pred_fallthru
      _
    // Predicated region
    $region18: #{tpu_custom_call.1} parent=1 // pred_check
      _
    $region19: #{tpu_custom_call.1} parent=1 // pred_check_branch
      %56 = sbr.rel (0) target = $region21
    $region20: #{tpu_custom_call.1} parent=1 // pred_region
      _
    $region21: #{tpu_custom_call.1} parent=1 // pred_fallthru
      _
    // Predicated region
    $region22: #{tpu_custom_call.1} parent=1 // pred_check
      _
    $region23: #{tpu_custom_call.1} parent=1 // pred_check_branch
      %58 = sbr.rel (0) target = $region25
    $region24: #{tpu_custom_call.1} parent=1 // pred_region
      %s60 = ssub.s32 4096, 4096
      %61 = vsyncadd [#allocation9], %s60
      %s62 = sshll.u32 [#allocation8], 4
      %s63 = int_to_ptr.vmem [resolvable:$true] %s62
      %68 = dma.hbm_to_vmem [thread:$0]  %s5, 4096, %s63, [#allocation9], 128, 128, 8
    $region25: #{tpu_custom_call.1} parent=1 // pred_fallthru
      _
    // Predicated region
    $region26: #{tpu_custom_call.1} parent=1 // pred_check
      _
    $region27: #{tpu_custom_call.1} parent=1 // pred_check_branch
      %70 = sbr.rel (0) target = $region29
    $region28: #{tpu_custom_call.1} parent=1 // pred_region
      _
    $region29: #{tpu_custom_call.1} parent=1 // pred_fallthru
      _
    // Predicated region
    $region30: #{tpu_custom_call.1} parent=1 // pred_check
      _
    $region31: #{tpu_custom_call.1} parent=1 // pred_check_branch
      %72 = sbr.rel (0) target = $region33
    $region32: #{tpu_custom_call.1} parent=1 // pred_region
      %73 = dma.done [#allocation4], 256
    $region33: #{tpu_custom_call.1} parent=1 // pred_fallthru
      _
    // Predicated region
    $region34: #{tpu_custom_call.1} parent=1 // pred_check
      _
    $region35: #{tpu_custom_call.1} parent=1 // pred_check_branch
      %75 = sbr.rel (0) target = $region37
    $region36: #{tpu_custom_call.1} parent=1 // pred_region
      %76 = dma.done [#allocation6], 1024
    $region37: #{tpu_custom_call.1} parent=1 // pred_fallthru
      _
    // Predicated region
    $region38: #{tpu_custom_call.1} parent=1 // pred_check
      _
    $region39: #{tpu_custom_call.1} parent=1 // pred_check_branch
      %78 = sbr.rel (0) target = $region41
    $region40: #{tpu_custom_call.1} parent=1 // pred_region
      %79 = dma.done [#allocation6], 8192
    $region41: #{tpu_custom_call.1} parent=1 // pred_fallthru
      _
    // Predicated region
    $region42: #{tpu_custom_call.1} parent=1 // pred_check
      _
    $region43: #{tpu_custom_call.1} parent=1 // pred_check_branch
      %81 = sbr.rel (0) target = $region45
    $region44: #{tpu_custom_call.1} parent=1 // pred_region
      %82 = dma.done [#allocation9], 4096
    $region45: #{tpu_custom_call.1} parent=1 // pred_fallthru
      _
    %v83 = vld [vmem:[#allocation3] sm:$0xff]
    %v84 = vld [vmem:[#allocation3 + $0x8] sm:$0xff]
    %v85 = vld [vmem:[#allocation5] sm:$0xff]
    %v86 = vld [vmem:[#allocation5 + $0x8] sm:$0xff]
    %v87 = vld [vmem:[#allocation5 + $0x10] sm:$0xff]
    %v88 = vld [vmem:[#allocation5 + $0x18] sm:$0xff]
    %v89 = vld [vmem:[#allocation5 + $0x20] sm:$0xff]
    %v90 = vld [vmem:[#allocation5 + $0x28] sm:$0xff]
    %v91 = vld [vmem:[#allocation5 + $0x30] sm:$0xff]
    %v92 = vld [vmem:[#allocation5 + $0x38] sm:$0xff]
    %v93 = vld [vmem:[%s2] sm:$0x3]
    %v95 = vlaneseq
    %v96 = vshrl.u32 %v95, 7
    %v97 = vsub.s32 0, %v96
    %v98 = vrot.slane %v93, %v97
    %v99 = vlaneseq
    %v100 = vshrl.u32 %v99, 7
    %v101 = vsub.s32 1, %v100
    %v102 = vrot.slane %v93, %v101
    %vm105 = vcmask 261120
    %v107 = vsel %vm105, %v83, 0
    %v110 = vsel %vm105, %v84, 0
    %112 = vmatprep.subr.mxu0 %v86
    %113 = vmatpush1.msra.mxu0 %v85
    %114 = vmatprep.subr.mxu0 %v88
    %115 = vmatpush1.msra.mxu0 %v87
    %116 = vmatprep.subr.mxu0 %v90
    %117 = vmatpush1.msra.mxu0 %v89
    %118 = vmatprep.subr.mxu0 %v92
    %119 = vmatpush1.msra.mxu0 %v91
    %120 = vmatprep.subr.mxu0 0.0
    %121 = vmatpush1.msra.mxu0 0.0
    %122 = vmatprep.subr.mxu0 0.0
    %123 = vmatpush1.msra.mxu0 0.0
    %124 = vmatprep.subr.mxu0 0.0
    %125 = vmatpush1.msra.mxu0 0.0
    %126 = vmatprep.subr.mxu0 0.0
    %127 = vmatpush1.msra.mxu0 0.0
    %128 = vmatprep.subr.mxu0 0.0
    %129 = vmatpush1.msra.mxu0 0.0
    %130 = vmatprep.subr.mxu0 0.0
    %131 = vmatpush1.msra.mxu0 0.0
    %132 = vmatprep.subr.mxu0 0.0
    %133 = vmatpush1.msra.mxu0 0.0
    %134 = vmatprep.subr.mxu0 0.0
    %135 = vmatpush1.msra.mxu0 0.0
    %136 = vmatprep.subr.mxu0 0.0
    %137 = vmatpush1.msra.mxu0 0.0
    %138 = vmatprep.subr.mxu0 0.0
    %139 = vmatpush1.msra.mxu0 0.0
    %140 = vmatprep.subr.mxu0 0.0
    %141 = vmatpush1.msra.mxu0 0.0
    %142 = vmatprep.subr.mxu0 0.0
    %143 = vmatpush1.msra.mxu0 0.0
    %144 = vmatprep.subr.mxu0 0.0
    %145 = vmatpush1.msra.mxu0 0.0
    %146 = vmatprep.subr.mxu0 0.0
    %147 = vmatpush1.msra.mxu0 0.0
    %148 = vmatprep.subr.mxu0 0.0
    %149 = vmatpush1.msra.mxu0 0.0
    %150 = vmatprep.subr.mxu0 0.0
    %151 = vmatpush1.msra.mxu0 0.0
    %152 = vmatprep.subr.mxu0 0.0
    %153 = vmatpush1.msra.mxu0 0.0
    %154 = vmatprep.subr.mxu0 0.0
    %155 = vmatpush1.msra.mxu0 0.0
    %156 = vmatprep.subr.mxu0 0.0
    %157 = vmatpush1.msra.mxu0 0.0
    %158 = vmatprep.subr.mxu0 0.0
    %159 = vmatpush1.msra.mxu0 0.0
    %160 = vmatprep.subr.mxu0 0.0
    %161 = vmatpush1.msra.mxu0 0.0
    %162 = vmatprep.subr.mxu0 0.0
    %163 = vmatpush1.msra.mxu0 0.0
    %164 = vmatprep.subr.mxu0 0.0
    %165 = vmatpush1.msra.mxu0 0.0
    %166 = vmatprep.subr.mxu0 0.0
    %167 = vmatpush1.msra.mxu0 0.0
    %168 = vmatprep.subr.mxu0 0.0
    %169 = vmatpush1.msra.mxu0 0.0
    %170 = vmatprep.subr.mxu0 0.0
    %171 = vmatpush1.msra.mxu0 0.0
    %172 = vmatprep.subr.mxu0 0.0
    %173 = vmatpush1.msra.mxu0 0.0
    %174 = vmatprep.subr.mxu0 0.0
    %175 = vmatpush1.msra.mxu0 0.0
    %176 = vmatprep.mubr.f32.mxu0 0.0
    %177 = vmatmul.mubr.f32.gmra.mrb[0].mxu0 %v107
    %v178 = vpop.f32.mrb[0].mxu0
    %v179 = vadd.f32 %v98, %v178
    %v180 = vpop.f32.mrb[0].mxu0
    %v181 = vadd.f32 %v102, %v180
    %182 = vmatprep.mubr.f32.mxu0 0.0
    %183 = vmatmul.mubr.f32.gmra.mrb[0].mxu0 %v110
    %v184 = vpop.f32.mrb[0].mxu0
    %v185 = vadd.f32 %v98, %v184
    %v186 = vpop.f32.mrb[0].mxu0
    %v187 = vadd.f32 %v102, %v186
    %188 = vdwg.mxu0
    %v189 = vmax.f32 %v179, 0.0
    %v190 = vmax.f32 %v181, 0.0
    %v191 = vmax.f32 %v185, 0.0
    %v192 = vmax.f32 %v187, 0.0
    %v193 = vld [vmem:[#allocation7] sm:$0xff]
    %v194 = vld [vmem:[#allocation7 + $0x8] sm:$0xff]
    %v195 = vld [vmem:[#allocation7 + $0x10] sm:$0xff]
    %v196 = vld [vmem:[#allocation7 + $0x18] sm:$0xff]
    %v197 = vld [vmem:[#allocation7 + $0x20] sm:$0xff]
    %v198 = vld [vmem:[#allocation7 + $0x28] sm:$0xff]
    %v199 = vld [vmem:[#allocation7 + $0x30] sm:$0xff]
    %v200 = vld [vmem:[#allocation7 + $0x38] sm:$0xff]
    %v201 = vld [vmem:[#allocation7 + $0x40] sm:$0xff]
    %v202 = vld [vmem:[#allocation7 + $0x48] sm:$0xff]
    %v203 = vld [vmem:[#allocation7 + $0x50] sm:$0xff]
    %v204 = vld [vmem:[#allocation7 + $0x58] sm:$0xff]
    %v205 = vld [vmem:[#allocation7 + $0x60] sm:$0xff]
    %v206 = vld [vmem:[#allocation7 + $0x68] sm:$0xff]
    %v207 = vld [vmem:[#allocation7 + $0x70] sm:$0xff]
    %v208 = vld [vmem:[#allocation7 + $0x78] sm:$0xff]
    %v209 = vld [vmem:[#allocation7 + $0x80] sm:$0xff]
    %v210 = vld [vmem:[#allocation7 + $0x88] sm:$0xff]
    %v211 = vld [vmem:[#allocation7 + $0x90] sm:$0xff]
    %v212 = vld [vmem:[#allocation7 + $0x98] sm:$0xff]
    %v213 = vld [vmem:[#allocation7 + $0xa0] sm:$0xff]
    %v214 = vld [vmem:[#allocation7 + $0xa8] sm:$0xff]
    %v215 = vld [vmem:[#allocation7 + $0xb0] sm:$0xff]
    %v216 = vld [vmem:[#allocation7 + $0xb8] sm:$0xff]
    %v217 = vld [vmem:[#allocation7 + $0xc0] sm:$0xff]
    %v218 = vld [vmem:[#allocation7 + $0xc8] sm:$0xff]
    %v219 = vld [vmem:[#allocation7 + $0xd0] sm:$0xff]
    %v220 = vld [vmem:[#allocation7 + $0xd8] sm:$0xff]
    %v221 = vld [vmem:[#allocation7 + $0xe0] sm:$0xff]
    %v222 = vld [vmem:[#allocation7 + $0xe8] sm:$0xff]
    %v223 = vld [vmem:[#allocation7 + $0xf0] sm:$0xff]
    %v224 = vld [vmem:[#allocation7 + $0xf8] sm:$0xff]
    %v225 = vld [vmem:[#allocation7 + $0x100] sm:$0xff]
    %v226 = vld [vmem:[#allocation7 + $0x108] sm:$0xff]
    %v227 = vld [vmem:[#allocation7 + $0x110] sm:$0xff]
    %v228 = vld [vmem:[#allocation7 + $0x118] sm:$0xff]
    %v229 = vld [vmem:[#allocation7 + $0x120] sm:$0xff]
    %v230 = vld [vmem:[#allocation7 + $0x128] sm:$0xff]
    %v231 = vld [vmem:[#allocation7 + $0x130] sm:$0xff]
    %v232 = vld [vmem:[#allocation7 + $0x138] sm:$0xff]
    %v233 = vld [vmem:[#allocation7 + $0x140] sm:$0xff]
    %v234 = vld [vmem:[#allocation7 + $0x148] sm:$0xff]
    %v235 = vld [vmem:[#allocation7 + $0x150] sm:$0xff]
    %v236 = vld [vmem:[#allocation7 + $0x158] sm:$0xff]
    %v237 = vld [vmem:[#allocation7 + $0x160] sm:$0xff]
    %v238 = vld [vmem:[#allocation7 + $0x168] sm:$0xff]
    %v239 = vld [vmem:[#allocation7 + $0x170] sm:$0xff]
    %v240 = vld [vmem:[#allocation7 + $0x178] sm:$0xff]
    %v241 = vld [vmem:[#allocation7 + $0x180] sm:$0xff]
    %v242 = vld [vmem:[#allocation7 + $0x188] sm:$0xff]
    %v243 = vld [vmem:[#allocation7 + $0x190] sm:$0xff]
    %v244 = vld [vmem:[#allocation7 + $0x198] sm:$0xff]
    %v245 = vld [vmem:[#allocation7 + $0x1a0] sm:$0xff]
    %v246 = vld [vmem:[#allocation7 + $0x1a8] sm:$0xff]
    %v247 = vld [vmem:[#allocation7 + $0x1b0] sm:$0xff]
    %v248 = vld [vmem:[#allocation7 + $0x1b8] sm:$0xff]
    %v249 = vld [vmem:[#allocation7 + $0x1c0] sm:$0xff]
    %v250 = vld [vmem:[#allocation7 + $0x1c8] sm:$0xff]
    %v251 = vld [vmem:[#allocation7 + $0x1d0] sm:$0xff]
    %v252 = vld [vmem:[#allocation7 + $0x1d8] sm:$0xff]
    %v253 = vld [vmem:[#allocation7 + $0x1e0] sm:$0xff]
    %v254 = vld [vmem:[#allocation7 + $0x1e8] sm:$0xff]
    %v255 = vld [vmem:[#allocation7 + $0x1f0] sm:$0xff]
    %v256 = vld [vmem:[#allocation7 + $0x1f8] sm:$0xff]
    %v257 = vld [vmem:[%s4] sm:$0x3]
    %v259 = vlaneseq
    %v260 = vshrl.u32 %v259, 7
    %v261 = vsub.s32 0, %v260
    %v262 = vrot.slane %v257, %v261
    %v263 = vlaneseq
    %v264 = vshrl.u32 %v263, 7
    %v265 = vsub.s32 1, %v264
    %v266 = vrot.slane %v257, %v265
    %269 = vmatprep.subr.mxu0 %v194
    %270 = vmatpush1.msra.mxu0 %v193
    %271 = vmatprep.subr.mxu0 %v196
    %272 = vmatpush1.msra.mxu0 %v195
    %273 = vmatprep.subr.mxu0 %v198
    %274 = vmatpush1.msra.mxu0 %v197
    %275 = vmatprep.subr.mxu0 %v200
    %276 = vmatpush1.msra.mxu0 %v199
    %277 = vmatprep.subr.mxu0 %v202
    %278 = vmatpush1.msra.mxu0 %v201
    %279 = vmatprep.subr.mxu0 %v204
    %280 = vmatpush1.msra.mxu0 %v203
    %281 = vmatprep.subr.mxu0 %v206
    %282 = vmatpush1.msra.mxu0 %v205
    %283 = vmatprep.subr.mxu0 %v208
    %284 = vmatpush1.msra.mxu0 %v207
    %285 = vmatprep.subr.mxu0 %v210
    %286 = vmatpush1.msra.mxu0 %v209
    %287 = vmatprep.subr.mxu0 %v212
    %288 = vmatpush1.msra.mxu0 %v211
    %289 = vmatprep.subr.mxu0 %v214
    %290 = vmatpush1.msra.mxu0 %v213
    %291 = vmatprep.subr.mxu0 %v216
    %292 = vmatpush1.msra.mxu0 %v215
    %293 = vmatprep.subr.mxu0 %v218
    %294 = vmatpush1.msra.mxu0 %v217
    %295 = vmatprep.subr.mxu0 %v220
    %296 = vmatpush1.msra.mxu0 %v219
    %297 = vmatprep.subr.mxu0 %v222
    %298 = vmatpush1.msra.mxu0 %v221
    %299 = vmatprep.subr.mxu0 %v224
    %300 = vmatpush1.msra.mxu0 %v223
    %301 = vmatprep.subr.mxu0 %v226
    %302 = vmatpush1.msra.mxu0 %v225
    %303 = vmatprep.subr.mxu0 %v228
    %304 = vmatpush1.msra.mxu0 %v227
    %305 = vmatprep.subr.mxu0 %v230
    %306 = vmatpush1.msra.mxu0 %v229
    %307 = vmatprep.subr.mxu0 %v232
    %308 = vmatpush1.msra.mxu0 %v231
    %309 = vmatprep.subr.mxu0 %v234
    %310 = vmatpush1.msra.mxu0 %v233
    %311 = vmatprep.subr.mxu0 %v236
    %312 = vmatpush1.msra.mxu0 %v235
    %313 = vmatprep.subr.mxu0 %v238
    %314 = vmatpush1.msra.mxu0 %v237
    %315 = vmatprep.subr.mxu0 %v240
    %316 = vmatpush1.msra.mxu0 %v239
    %317 = vmatprep.subr.mxu0 %v242
    %318 = vmatpush1.msra.mxu0 %v241
    %319 = vmatprep.subr.mxu0 %v244
    %320 = vmatpush1.msra.mxu0 %v243
    %321 = vmatprep.subr.mxu0 %v246
    %322 = vmatpush1.msra.mxu0 %v245
    %323 = vmatprep.subr.mxu0 %v248
    %324 = vmatpush1.msra.mxu0 %v247
    %325 = vmatprep.subr.mxu0 %v250
    %326 = vmatpush1.msra.mxu0 %v249
    %327 = vmatprep.subr.mxu0 %v252
    %328 = vmatpush1.msra.mxu0 %v251
    %329 = vmatprep.subr.mxu0 %v254
    %330 = vmatpush1.msra.mxu0 %v253
    %331 = vmatprep.subr.mxu0 %v256
    %332 = vmatpush1.msra.mxu0 %v255
    %333 = vmatprep.mubr.f32.mxu0 %v190
    %334 = vmatmul.mubr.f32.gmra.mrb[0].mxu0 %v189
    %v335 = vpop.f32.mrb[0].mxu0
    %v336 = vadd.f32 %v262, %v335
    %v337 = vpop.f32.mrb[0].mxu0
    %v338 = vadd.f32 %v266, %v337
    %339 = vmatprep.mubr.f32.mxu0 %v192
    %340 = vmatmul.mubr.f32.gmra.mrb[0].mxu0 %v191
    %v341 = vpop.f32.mrb[0].mxu0
    %v342 = vadd.f32 %v262, %v341
    %v343 = vpop.f32.mrb[0].mxu0
    %v344 = vadd.f32 %v266, %v343
    %345 = vdwg.mxu0
    %v346 = vmax.f32 %v336, 0.0
    %v347 = vmax.f32 %v338, 0.0
    %v348 = vmax.f32 %v342, 0.0
    %v349 = vmax.f32 %v344, 0.0
    %v350 = vld [vmem:[#allocation8] sm:$0xff]
    %v351 = vld [vmem:[#allocation8 + $0x8] sm:$0xff]
    %v352 = vld [vmem:[#allocation8 + $0x10] sm:$0xff]
    %v353 = vld [vmem:[#allocation8 + $0x18] sm:$0xff]
    %v354 = vld [vmem:[#allocation8 + $0x20] sm:$0xff]
    %v355 = vld [vmem:[#allocation8 + $0x28] sm:$0xff]
    %v356 = vld [vmem:[#allocation8 + $0x30] sm:$0xff]
    %v357 = vld [vmem:[#allocation8 + $0x38] sm:$0xff]
    %v358 = vld [vmem:[#allocation8 + $0x40] sm:$0xff]
    %v359 = vld [vmem:[#allocation8 + $0x48] sm:$0xff]
    %v360 = vld [vmem:[#allocation8 + $0x50] sm:$0xff]
    %v361 = vld [vmem:[#allocation8 + $0x58] sm:$0xff]
    %v362 = vld [vmem:[#allocation8 + $0x60] sm:$0xff]
    %v363 = vld [vmem:[#allocation8 + $0x68] sm:$0xff]
    %v364 = vld [vmem:[#allocation8 + $0x70] sm:$0xff]
    %v365 = vld [vmem:[#allocation8 + $0x78] sm:$0xff]
    %v366 = vld [vmem:[#allocation8 + $0x80] sm:$0xff]
    %v367 = vld [vmem:[#allocation8 + $0x88] sm:$0xff]
    %v368 = vld [vmem:[#allocation8 + $0x90] sm:$0xff]
    %v369 = vld [vmem:[#allocation8 + $0x98] sm:$0xff]
    %v370 = vld [vmem:[#allocation8 + $0xa0] sm:$0xff]
    %v371 = vld [vmem:[#allocation8 + $0xa8] sm:$0xff]
    %v372 = vld [vmem:[#allocation8 + $0xb0] sm:$0xff]
    %v373 = vld [vmem:[#allocation8 + $0xb8] sm:$0xff]
    %v374 = vld [vmem:[#allocation8 + $0xc0] sm:$0xff]
    %v375 = vld [vmem:[#allocation8 + $0xc8] sm:$0xff]
    %v376 = vld [vmem:[#allocation8 + $0xd0] sm:$0xff]
    %v377 = vld [vmem:[#allocation8 + $0xd8] sm:$0xff]
    %v378 = vld [vmem:[#allocation8 + $0xe0] sm:$0xff]
    %v379 = vld [vmem:[#allocation8 + $0xe8] sm:$0xff]
    %v380 = vld [vmem:[#allocation8 + $0xf0] sm:$0xff]
    %v381 = vld [vmem:[#allocation8 + $0xf8] sm:$0xff]
    %382 = vmatprep.subr.mxu0 0.0
    %383 = vmatpush1.msra.mxu0 %v350
    %384 = vmatprep.subr.mxu0 0.0
    %385 = vmatpush1.msra.mxu0 %v351
    %386 = vmatprep.subr.mxu0 0.0
    %387 = vmatpush1.msra.mxu0 %v352
    %388 = vmatprep.subr.mxu0 0.0
    %389 = vmatpush1.msra.mxu0 %v353
    %390 = vmatprep.subr.mxu0 0.0
    %391 = vmatpush1.msra.mxu0 %v354
    %392 = vmatprep.subr.mxu0 0.0
    %393 = vmatpush1.msra.mxu0 %v355
    %394 = vmatprep.subr.mxu0 0.0
    %395 = vmatpush1.msra.mxu0 %v356
    %396 = vmatprep.subr.mxu0 0.0
    %397 = vmatpush1.msra.mxu0 %v357
    %398 = vmatprep.subr.mxu0 0.0
    %399 = vmatpush1.msra.mxu0 %v358
    %400 = vmatprep.subr.mxu0 0.0
    %401 = vmatpush1.msra.mxu0 %v359
    %402 = vmatprep.subr.mxu0 0.0
    %403 = vmatpush1.msra.mxu0 %v360
    %404 = vmatprep.subr.mxu0 0.0
    %405 = vmatpush1.msra.mxu0 %v361
    %406 = vmatprep.subr.mxu0 0.0
    %407 = vmatpush1.msra.mxu0 %v362
    %408 = vmatprep.subr.mxu0 0.0
    %409 = vmatpush1.msra.mxu0 %v363
    %410 = vmatprep.subr.mxu0 0.0
    %411 = vmatpush1.msra.mxu0 %v364
    %412 = vmatprep.subr.mxu0 0.0
    %413 = vmatpush1.msra.mxu0 %v365
    %414 = vmatprep.subr.mxu0 0.0
    %415 = vmatpush1.msra.mxu0 %v366
    %416 = vmatprep.subr.mxu0 0.0
    %417 = vmatpush1.msra.mxu0 %v367
    %418 = vmatprep.subr.mxu0 0.0
    %419 = vmatpush1.msra.mxu0 %v368
    %420 = vmatprep.subr.mxu0 0.0
    %421 = vmatpush1.msra.mxu0 %v369
    %422 = vmatprep.subr.mxu0 0.0
    %423 = vmatpush1.msra.mxu0 %v370
    %424 = vmatprep.subr.mxu0 0.0
    %425 = vmatpush1.msra.mxu0 %v371
    %426 = vmatprep.subr.mxu0 0.0
    %427 = vmatpush1.msra.mxu0 %v372
    %428 = vmatprep.subr.mxu0 0.0
    %429 = vmatpush1.msra.mxu0 %v373
    %430 = vmatprep.subr.mxu0 0.0
    %431 = vmatpush1.msra.mxu0 %v374
    %432 = vmatprep.subr.mxu0 0.0
    %433 = vmatpush1.msra.mxu0 %v375
    %434 = vmatprep.subr.mxu0 0.0
    %435 = vmatpush1.msra.mxu0 %v376
    %436 = vmatprep.subr.mxu0 0.0
    %437 = vmatpush1.msra.mxu0 %v377
    %438 = vmatprep.subr.mxu0 0.0
    %439 = vmatpush1.msra.mxu0 %v378
    %440 = vmatprep.subr.mxu0 0.0
    %441 = vmatpush1.msra.mxu0 %v379
    %442 = vmatprep.subr.mxu0 0.0
    %443 = vmatpush1.msra.mxu0 %v380
    %444 = vmatprep.subr.mxu0 0.0
    %445 = vmatpush1.msra.mxu0 %v381
    %446 = vmatprep.mubr.f32.mxu0 %v347
    %447 = vmatmul.mubr.f32.gmra.mrb[0].mxu0 %v346
    %v448 = vpop.f32.mrb[0].mxu0
    %v449 = vadd.f32 0.0, %v448
    %v450 = vpop.f32.mrb[0].mxu0
    %451 = vmatprep.mubr.f32.mxu0 %v349
    %452 = vmatmul.mubr.f32.gmra.mrb[0].mxu0 %v348
    %v453 = vpop.f32.mrb[0].mxu0
    %v454 = vadd.f32 0.0, %v453
    %v455 = vpop.f32.mrb[0].mxu0
    %456 = vdwg.mxu0
    %v457 = vld [vmem:[#allocation2] sm:$0x1]
    %v459 = vlaneseq
    %v460 = vshrl.u32 %v459, 7
    %v461 = vsub.s32 0, %v460
    %v462 = vrot.slane %v457, %v461
    %v464 = vadd.f32 %v449, %v462
    %v465 = vadd.f32 %v454, %v462
    %vm466 = vcmask 7168
    %467 = vst.msk [vmem:[%s7] sm:$0xff] %vm466, %v464
    %468 = vst.msk [vmem:[%s7 + $0x8] sm:$0xff] %vm466, %v465
    // Predicated region
    $region46: #{tpu_custom_call.1} parent=1 // pred_check
      _
    $region47: #{tpu_custom_call.1} parent=1 // pred_check_branch
      %470 = sbr.rel (0) target = $region49
    $region48: #{tpu_custom_call.1} parent=1 // pred_region
      _
    $region49: #{tpu_custom_call.1} parent=1 // pred_fallthru
      _
    // Predicated region
    $region50: #{tpu_custom_call.1} parent=1 // pred_check
      _
    $region51: #{tpu_custom_call.1} parent=1 // pred_check_branch
      %472 = sbr.rel (0) target = $region53
    $region52: #{tpu_custom_call.1} parent=1 // pred_region
      _
    $region53: #{tpu_custom_call.1} parent=1 // pred_fallthru
      _
    %473 = vsyncpa [#allocation4], 1
    %474 = vsyncpa [#allocation6], 1
    %475 = vsyncpa [#allocation9], 1

</llo_original>
